<compile_context>
chip_gen: v7x
topology: tpu7x:2x2x1
jax: 0.10.0
libtpu: 0.0.40
codegen_flags: <defaults>
</compile_context>

<pallas_src>
import jax
import jax.numpy as jnp
from jax.experimental import pallas as pl
from jax.experimental.pallas import tpu as pltpu

# ----------------------------- model dims (small) ---------------------------
B = 2           # batch
S = 8           # sequence length
H = 32          # bert hidden size
F = 4 * H       # ffn intermediate (=128, one full lane tile)
E = 16          # label_embedding_size
L = 5           # num_labels
LPAD = 128      # classifier output lanes padded to a full lane tile
VOCAB = 64

# column offsets inside the packed H-row weight slab: Wq|Wk|Wv | Wo | Wpool | Wff1
_OFF_QKV = 0
_OFF_O = 3 * H
_OFF_POOL = 4 * H
_OFF_FF1 = 5 * H
_WSLAB_COLS = 5 * H + F          # 288


def _gelu(x):
    # tanh approximation (EUP tanh). TODO(synk): HF BERT uses exact erf GELU.
    c = jnp.float32(0.7978845608028654)  # sqrt(2/pi)
    return 0.5 * x * (1.0 + jnp.tanh(c * (x + 0.044715 * x * x * x)))


def _layernorm(x, g, b):
    mu = jnp.mean(x, axis=-1, keepdims=True)
    var = jnp.mean((x - mu) ** 2, axis=-1, keepdims=True)
    return (x - mu) * jax.lax.rsqrt(var + 1e-12) * g + b


def custom_model_kernel(
    x_ref,        # [B, S, H] f32 embeddings
    abias_ref,    # [B, 1, S] f32 additive attention bias (0 or -1e9)
    lab_ref,      # [B, E]    f32 label embeddings
    w_h_ref,      # [H, 288]  packed Wq|Wk|Wv|Wo|Wpool|Wff1
    w_ff2_ref,    # [F, H]
    w_cls_ref,    # [H+E, LPAD] classifier (cols >= L are zero)
    bias_ref,     # [10, 128] packed biases / LN gamma,beta
    out_ref,      # [B, LPAD]
):
    x3 = x_ref[...]                              # [B, S, H]
    Bq, Sq, Hq = x3.shape
    x = x3.reshape(Bq * Sq, Hq)                  # [B*S, H] — 2-D matmuls everywhere
    abias = abias_ref[...]                       # [B, 1, S]
    lab = lab_ref[...]                           # [B, E]

    w_h = w_h_ref[...]                           # [H, 288]
    w_qkv = w_h[:, _OFF_QKV:_OFF_QKV + 3 * H]    # [H, 3H]
    w_o = w_h[:, _OFF_O:_OFF_O + H]              # [H, H]
    w_pool = w_h[:, _OFF_POOL:_OFF_POOL + H]     # [H, H]
    w_ff1 = w_h[:, _OFF_FF1:_OFF_FF1 + F]        # [H, F]

    bias = bias_ref[...]                         # [10, 128]
    b_qkv = bias[0:1, 0:3 * H]
    b_o = bias[1:2, 0:H]
    ln1g = bias[2:3, 0:H]
    ln1b = bias[3:4, 0:H]
    b_ff1 = bias[4:5, 0:F]
    b_ff2 = bias[5:6, 0:H]
    ln2g = bias[6:7, 0:H]
    ln2b = bias[7:8, 0:H]
    b_pool = bias[8:9, 0:H]
    b_cls = bias[9:10, :]                        # [1, LPAD]

    scale = jnp.float32(1.0 / float(H) ** 0.5)

    # --- self attention (single head), fused QKV projection ---
    qkv = jnp.dot(x, w_qkv, preferred_element_type=jnp.float32) + b_qkv   # [B*S, 3H]
    q = qkv[:, 0:H].reshape(Bq, Sq, Hq)
    k = qkv[:, H:2 * H].reshape(Bq, Sq, Hq)
    v = qkv[:, 2 * H:3 * H].reshape(Bq, Sq, Hq)

    s = jnp.einsum('bqd,bkd->bqk', q, k, preferred_element_type=jnp.float32) * scale
    s = s + abias                                # mask out padded keys
    s = s - jnp.max(s, axis=-1, keepdims=True)
    p = jnp.exp(s)
    p = p / jnp.sum(p, axis=-1, keepdims=True)
    ctx = jnp.einsum('bqk,bkd->bqd', p, v, preferred_element_type=jnp.float32)
    ctx2 = ctx.reshape(Bq * Sq, Hq)
    attn = jnp.dot(ctx2, w_o, preferred_element_type=jnp.float32) + b_o    # [B*S, H]

    h1 = _layernorm(x + attn, ln1g, ln1b)

    # --- feed forward (2-D matmuls) ---
    ff = _gelu(jnp.dot(h1, w_ff1, preferred_element_type=jnp.float32) + b_ff1)
    ff = jnp.dot(ff, w_ff2_ref[...], preferred_element_type=jnp.float32) + b_ff2
    h2 = _layernorm(h1 + ff, ln2g, ln2b)

    # --- BERT pooler: tanh(dense(CLS token)) ---
    cls = h2.reshape(Bq, Sq, Hq)[:, 0, :]                                  # [B, H]
    pooled = jnp.tanh(jnp.dot(cls, w_pool, preferred_element_type=jnp.float32) + b_pool)

    # --- classifier over concat([pooled, label_embeddings]) — single fused matmul ---
    comb = jnp.concatenate([pooled, lab], axis=1)                          # [B, H+E]
    logits = jnp.dot(comb, w_cls_ref[...], preferred_element_type=jnp.float32) + b_cls
    out_ref[...] = logits.astype(out_ref.dtype)                            # [B, LPAD]


def init_params(key):
    def nrm(k, shape, scale=0.02):
        return (scale * jax.random.normal(k, shape)).astype(jnp.float32)

    ks = jax.random.split(key, 12)
    tok_emb = nrm(ks[0], (VOCAB, H))
    pos_emb = nrm(ks[1], (S, H))
    wq = nrm(ks[2], (H, H))
    wk = nrm(ks[3], (H, H))
    wv = nrm(ks[4], (H, H))
    wo = nrm(ks[5], (H, H))
    wpool = nrm(ks[6], (H, H))
    wff1 = nrm(ks[7], (H, F))
    wff2 = nrm(ks[8], (F, H))
    wcls_h = nrm(ks[9], (H, L))     # classifier weight, pooled-hidden part
    wcls_e = nrm(ks[10], (E, L))    # classifier weight, label-embedding part

    # --- packed slabs handed to the kernel (built once, not per forward) ---
    w_hslab = jnp.concatenate([wq, wk, wv, wo, wpool, wff1], axis=1)      # [H, 288]
    assert w_hslab.shape == (H, _WSLAB_COLS)

    w_cls = jnp.zeros((H + E, LPAD), jnp.float32)
    w_cls = w_cls.at[0:H, 0:L].set(wcls_h).at[H:H + E, 0:L].set(wcls_e)   # [H+E, 128]

    # bias / layernorm slab: one row each, padded to 128 lanes.
    # rows: 0 b_qkv | 1 b_o | 2 ln1_g | 3 ln1_b | 4 b_ff1 | 5 b_ff2
    #       6 ln2_g | 7 ln2_b | 8 b_pool | 9 b_cls
    biasslab = jnp.zeros((10, 128), jnp.float32)
    biasslab = biasslab.at[2, 0:H].set(1.0)   # ln1 gamma
    biasslab = biasslab.at[6, 0:H].set(1.0)   # ln2 gamma
    # (all dense biases initialize to zero, matching the reference init)

    return dict(
        tok_emb=tok_emb, pos_emb=pos_emb,
        w_hslab=w_hslab, w_ff2=wff2, w_cls=w_cls, biasslab=biasslab,
    )


@jax.jit
def custom_model_forward(input_ids, attention_mask, label_embeddings, params):
    # glue kept in plain JAX: embedding gather + additive attention-mask bias
    x = jnp.take(params['tok_emb'], input_ids, axis=0) + params['pos_emb'][None, :, :]
    attn_bias = ((1.0 - attention_mask.astype(jnp.float32))
                 * jnp.float32(-1e9))[:, None, :]                          # [B, 1, S]

    args = [
        x, attn_bias, label_embeddings.astype(jnp.float32),
        params['w_hslab'], params['w_ff2'], params['w_cls'], params['biasslab'],
    ]
    vmem_spec = pl.BlockSpec(memory_space=pltpu.MemorySpace.VMEM)
    logits_pad = pl.pallas_call(
        custom_model_kernel,
        out_shape=jax.ShapeDtypeStruct((input_ids.shape[0], LPAD), jnp.float32),
        in_specs=[vmem_spec] * len(args),
        out_specs=vmem_spec,
    )(*args)
    return logits_pad[:, :L]                       # drop lane padding


if __name__ == "__main__":
    key = jax.random.PRNGKey(0)
    kp, ki, kl = jax.random.split(key, 3)

    params = init_params(kp)

    input_ids = jax.random.randint(ki, (B, S), 0, VOCAB, dtype=jnp.int32)
    attention_mask = jnp.array(
        [[1, 1, 1, 1, 1, 1, 1, 1],
         [1, 1, 1, 1, 1, 1, 0, 0]], dtype=jnp.int32)
    label_embeddings = (0.1 * jax.random.normal(kl, (B, E))).astype(jnp.float32)

    logits = custom_model_forward(input_ids, attention_mask, label_embeddings, params)
    jax.block_until_ready(logits)
    assert logits.shape == (B, L) and logits.dtype == jnp.float32
    print("KERNEL_OK")
</pallas_src>

<mosaic_0001>
module attributes {stable_mosaic.version = 11 : i64} {
  func.func @custom_model_kernel(%arg0: memref<2x8x32xf32, #tpu.memory_space<vmem>>, %arg1: memref<2x1x8xf32, #tpu.memory_space<vmem>>, %arg2: memref<2x16xf32, #tpu.memory_space<vmem>>, %arg3: memref<32x288xf32, #tpu.memory_space<vmem>>, %arg4: memref<128x32xf32, #tpu.memory_space<vmem>>, %arg5: memref<48x128xf32, #tpu.memory_space<vmem>>, %arg6: memref<10x128xf32, #tpu.memory_space<vmem>>, %arg7: memref<2x128xf32, #tpu.memory_space<vmem>>) attributes {dimension_semantics = [], scalar_prefetch = 0 : i64, scratch_operands = 0 : i64, tpu.core_type = #tpu.core_type<tc>} {
    %c0 = arith.constant 0 : index
    %c0_0 = arith.constant 0 : index
    %c0_1 = arith.constant 0 : index
    %0 = vector.load %arg0[%c0, %c0_0, %c0_1] : memref<2x8x32xf32, #tpu.memory_space<vmem>>, vector<2x8x32xf32>
    %1 = vector.shape_cast %0 : vector<2x8x32xf32> to vector<16x32xf32>
    %c0_2 = arith.constant 0 : index
    %c0_3 = arith.constant 0 : index
    %c0_4 = arith.constant 0 : index
    %2 = vector.load %arg1[%c0_2, %c0_3, %c0_4] : memref<2x1x8xf32, #tpu.memory_space<vmem>>, vector<2x1x8xf32>
    %c0_5 = arith.constant 0 : index
    %c0_6 = arith.constant 0 : index
    %3 = vector.load %arg2[%c0_5, %c0_6] : memref<2x16xf32, #tpu.memory_space<vmem>>, vector<2x16xf32>
    %c0_7 = arith.constant 0 : index
    %c0_8 = arith.constant 0 : index
    %4 = vector.load %arg3[%c0_7, %c0_8] : memref<32x288xf32, #tpu.memory_space<vmem>>, vector<32x288xf32>
    %5 = vector.extract_strided_slice %4 {offsets = [0, 0], sizes = [32, 96], strides = [1, 1]} : vector<32x288xf32> to vector<32x96xf32>
    %6 = vector.extract_strided_slice %4 {offsets = [0, 96], sizes = [32, 32], strides = [1, 1]} : vector<32x288xf32> to vector<32x32xf32>
    %7 = vector.extract_strided_slice %4 {offsets = [0, 128], sizes = [32, 32], strides = [1, 1]} : vector<32x288xf32> to vector<32x32xf32>
    %8 = vector.extract_strided_slice %4 {offsets = [0, 160], sizes = [32, 128], strides = [1, 1]} : vector<32x288xf32> to vector<32x128xf32>
    %c0_9 = arith.constant 0 : index
    %c0_10 = arith.constant 0 : index
    %9 = vector.load %arg6[%c0_9, %c0_10] : memref<10x128xf32, #tpu.memory_space<vmem>>, vector<10x128xf32>
    %10 = vector.extract_strided_slice %9 {offsets = [0, 0], sizes = [1, 96], strides = [1, 1]} : vector<10x128xf32> to vector<1x96xf32>
    %11 = vector.extract_strided_slice %9 {offsets = [1, 0], sizes = [1, 32], strides = [1, 1]} : vector<10x128xf32> to vector<1x32xf32>
    %12 = vector.extract_strided_slice %9 {offsets = [2, 0], sizes = [1, 32], strides = [1, 1]} : vector<10x128xf32> to vector<1x32xf32>
    %13 = vector.extract_strided_slice %9 {offsets = [3, 0], sizes = [1, 32], strides = [1, 1]} : vector<10x128xf32> to vector<1x32xf32>
    %14 = vector.extract_strided_slice %9 {offsets = [4, 0], sizes = [1, 128], strides = [1, 1]} : vector<10x128xf32> to vector<1x128xf32>
    %15 = vector.extract_strided_slice %9 {offsets = [5, 0], sizes = [1, 32], strides = [1, 1]} : vector<10x128xf32> to vector<1x32xf32>
    %16 = vector.extract_strided_slice %9 {offsets = [6, 0], sizes = [1, 32], strides = [1, 1]} : vector<10x128xf32> to vector<1x32xf32>
    %17 = vector.extract_strided_slice %9 {offsets = [7, 0], sizes = [1, 32], strides = [1, 1]} : vector<10x128xf32> to vector<1x32xf32>
    %18 = vector.extract_strided_slice %9 {offsets = [8, 0], sizes = [1, 32], strides = [1, 1]} : vector<10x128xf32> to vector<1x32xf32>
    %19 = vector.extract_strided_slice %9 {offsets = [9, 0], sizes = [1, 128], strides = [1, 1]} : vector<10x128xf32> to vector<1x128xf32>
    %cst = arith.constant dense<0.000000e+00> : vector<16x96xf32>
    %20 = tpu.matmul %1, %5, %cst {dimension_numbers = #tpu.dot_dimension_numbers<[1], [0], [0], [1], [0, 0, 1, 1], [], []>} : vector<16x32xf32>, vector<32x96xf32>, vector<16x96xf32> -> vector<16x96xf32>
    %21 = vector.broadcast %10 : vector<1x96xf32> to vector<16x96xf32>
    %22 = arith.addf %20, %21 : vector<16x96xf32>
    %23 = vector.extract_strided_slice %22 {offsets = [0, 0], sizes = [16, 32], strides = [1, 1]} : vector<16x96xf32> to vector<16x32xf32>
    %24 = vector.shape_cast %23 : vector<16x32xf32> to vector<2x8x32xf32>
    %25 = vector.extract_strided_slice %22 {offsets = [0, 32], sizes = [16, 32], strides = [1, 1]} : vector<16x96xf32> to vector<16x32xf32>
    %26 = vector.shape_cast %25 : vector<16x32xf32> to vector<2x8x32xf32>
    %27 = vector.extract_strided_slice %22 {offsets = [0, 64], sizes = [16, 32], strides = [1, 1]} : vector<16x96xf32> to vector<16x32xf32>
    %28 = vector.shape_cast %27 : vector<16x32xf32> to vector<2x8x32xf32>
    "tpu.trace_start"() <{level = 10 : i32, message = "bqd,bkd->bqk"}> : () -> ()
    %cst_11 = arith.constant dense<0.000000e+00> : vector<2x8x8xf32>
    %29 = tpu.matmul %24, %26, %cst_11 {dimension_numbers = #tpu.dot_dimension_numbers<[2], [2], [1], [1], [0, 0, 0, 1, 1, 1], [0], [0]>} : vector<2x8x32xf32>, vector<2x8x32xf32>, vector<2x8x8xf32> -> vector<2x8x8xf32>
    "tpu.trace_stop"() : () -> ()
    %cst_12 = arith.constant 0.176776692 : f32
    %30 = vector.broadcast %cst_12 : f32 to vector<2x8x8xf32>
    %31 = arith.mulf %29, %30 : vector<2x8x8xf32>
    %32 = vector.broadcast %2 : vector<2x1x8xf32> to vector<2x8x8xf32>
    %33 = arith.addf %31, %32 : vector<2x8x8xf32>
    %cst_13 = arith.constant dense<0xFF800000> : vector<2x8xf32>
    %34 = vector.multi_reduction <maximumf>, %33, %cst_13 [2] : vector<2x8x8xf32> to vector<2x8xf32>
    %35 = vector.shape_cast %34 : vector<2x8xf32> to vector<2x8x1xf32>
    %36 = vector.broadcast %35 : vector<2x8x1xf32> to vector<2x8x8xf32>
    %37 = arith.subf %33, %36 : vector<2x8x8xf32>
    %38 = math.exp %37 : vector<2x8x8xf32>
    %cst_14 = arith.constant dense<0.000000e+00> : vector<2x8xf32>
    %39 = vector.multi_reduction <add>, %38, %cst_14 [2] : vector<2x8x8xf32> to vector<2x8xf32>
    %40 = vector.shape_cast %39 : vector<2x8xf32> to vector<2x8x1xf32>
    %41 = vector.broadcast %40 : vector<2x8x1xf32> to vector<2x8x8xf32>
    %42 = arith.divf %38, %41 : vector<2x8x8xf32>
    "tpu.trace_start"() <{level = 10 : i32, message = "bqk,bkd->bqd"}> : () -> ()
    %cst_15 = arith.constant dense<0.000000e+00> : vector<2x8x32xf32>
    %43 = tpu.matmul %42, %28, %cst_15 {dimension_numbers = #tpu.dot_dimension_numbers<[2], [1], [1], [2], [0, 0, 0, 1, 1, 2], [0], [0]>} : vector<2x8x8xf32>, vector<2x8x32xf32>, vector<2x8x32xf32> -> vector<2x8x32xf32>
    "tpu.trace_stop"() : () -> ()
    %44 = vector.shape_cast %43 : vector<2x8x32xf32> to vector<16x32xf32>
    %cst_16 = arith.constant dense<0.000000e+00> : vector<16x32xf32>
    %45 = tpu.matmul %44, %6, %cst_16 {dimension_numbers = #tpu.dot_dimension_numbers<[1], [0], [0], [1], [0, 0, 1, 1], [], []>} : vector<16x32xf32>, vector<32x32xf32>, vector<16x32xf32> -> vector<16x32xf32>
    %46 = vector.broadcast %11 : vector<1x32xf32> to vector<16x32xf32>
    %47 = arith.addf %45, %46 : vector<16x32xf32>
    %48 = arith.addf %1, %47 : vector<16x32xf32>
    %cst_17 = arith.constant dense<0.000000e+00> : vector<16xf32>
    %49 = vector.multi_reduction <add>, %48, %cst_17 [1] : vector<16x32xf32> to vector<16xf32>
    %50 = vector.shape_cast %49 : vector<16xf32> to vector<16x1xf32>
    %cst_18 = arith.constant 3.200000e+01 : f32
    %51 = vector.broadcast %cst_18 : f32 to vector<16x1xf32>
    %52 = arith.divf %50, %51 : vector<16x1xf32>
    %53 = vector.broadcast %52 : vector<16x1xf32> to vector<16x32xf32>
    %54 = arith.subf %48, %53 : vector<16x32xf32>
    %55 = arith.mulf %54, %54 : vector<16x32xf32>
    %cst_19 = arith.constant dense<0.000000e+00> : vector<16xf32>
    %56 = vector.multi_reduction <add>, %55, %cst_19 [1] : vector<16x32xf32> to vector<16xf32>
    %57 = vector.shape_cast %56 : vector<16xf32> to vector<16x1xf32>
    %cst_20 = arith.constant 3.200000e+01 : f32
    %58 = vector.broadcast %cst_20 : f32 to vector<16x1xf32>
    %59 = arith.divf %57, %58 : vector<16x1xf32>
    %60 = vector.broadcast %52 : vector<16x1xf32> to vector<16x32xf32>
    %61 = arith.subf %48, %60 : vector<16x32xf32>
    %cst_21 = arith.constant 9.99999996E-13 : f32
    %62 = vector.broadcast %cst_21 : f32 to vector<16x1xf32>
    %63 = arith.addf %59, %62 : vector<16x1xf32>
    %64 = math.rsqrt %63 : vector<16x1xf32>
    %65 = vector.broadcast %64 : vector<16x1xf32> to vector<16x32xf32>
    %66 = arith.mulf %61, %65 : vector<16x32xf32>
    %67 = vector.broadcast %12 : vector<1x32xf32> to vector<16x32xf32>
    %68 = arith.mulf %66, %67 : vector<16x32xf32>
    %69 = vector.broadcast %13 : vector<1x32xf32> to vector<16x32xf32>
    %70 = arith.addf %68, %69 : vector<16x32xf32>
    %cst_22 = arith.constant dense<0.000000e+00> : vector<16x128xf32>
    %71 = tpu.matmul %70, %8, %cst_22 {dimension_numbers = #tpu.dot_dimension_numbers<[1], [0], [0], [1], [0, 0, 1, 1], [], []>} : vector<16x32xf32>, vector<32x128xf32>, vector<16x128xf32> -> vector<16x128xf32>
    %72 = vector.broadcast %14 : vector<1x128xf32> to vector<16x128xf32>
    %73 = arith.addf %71, %72 : vector<16x128xf32>
    %cst_23 = arith.constant 5.000000e-01 : f32
    %74 = vector.broadcast %cst_23 : f32 to vector<16x128xf32>
    %75 = arith.mulf %74, %73 : vector<16x128xf32>
    %cst_24 = arith.constant 4.471500e-02 : f32
    %76 = vector.broadcast %cst_24 : f32 to vector<16x128xf32>
    %77 = arith.mulf %76, %73 : vector<16x128xf32>
    %78 = arith.mulf %77, %73 : vector<16x128xf32>
    %79 = arith.mulf %78, %73 : vector<16x128xf32>
    %80 = arith.addf %73, %79 : vector<16x128xf32>
    %cst_25 = arith.constant 0.797884583 : f32
    %81 = vector.broadcast %cst_25 : f32 to vector<16x128xf32>
    %82 = arith.mulf %81, %80 : vector<16x128xf32>
    %83 = math.tanh %82 : vector<16x128xf32>
    %cst_26 = arith.constant 1.000000e+00 : f32
    %84 = vector.broadcast %cst_26 : f32 to vector<16x128xf32>
    %85 = arith.addf %84, %83 : vector<16x128xf32>
    %86 = arith.mulf %75, %85 : vector<16x128xf32>
    %c0_27 = arith.constant 0 : index
    %c0_28 = arith.constant 0 : index
    %87 = vector.load %arg4[%c0_27, %c0_28] : memref<128x32xf32, #tpu.memory_space<vmem>>, vector<128x32xf32>
    %cst_29 = arith.constant dense<0.000000e+00> : vector<16x32xf32>
    %88 = tpu.matmul %86, %87, %cst_29 {dimension_numbers = #tpu.dot_dimension_numbers<[1], [0], [0], [1], [0, 0, 1, 1], [], []>} : vector<16x128xf32>, vector<128x32xf32>, vector<16x32xf32> -> vector<16x32xf32>
    %89 = vector.broadcast %15 : vector<1x32xf32> to vector<16x32xf32>
    %90 = arith.addf %88, %89 : vector<16x32xf32>
    %91 = arith.addf %70, %90 : vector<16x32xf32>
    %cst_30 = arith.constant dense<0.000000e+00> : vector<16xf32>
    %92 = vector.multi_reduction <add>, %91, %cst_30 [1] : vector<16x32xf32> to vector<16xf32>
    %93 = vector.shape_cast %92 : vector<16xf32> to vector<16x1xf32>
    %cst_31 = arith.constant 3.200000e+01 : f32
    %94 = vector.broadcast %cst_31 : f32 to vector<16x1xf32>
    %95 = arith.divf %93, %94 : vector<16x1xf32>
    %96 = vector.broadcast %95 : vector<16x1xf32> to vector<16x32xf32>
    %97 = arith.subf %91, %96 : vector<16x32xf32>
    %98 = arith.mulf %97, %97 : vector<16x32xf32>
    %cst_32 = arith.constant dense<0.000000e+00> : vector<16xf32>
    %99 = vector.multi_reduction <add>, %98, %cst_32 [1] : vector<16x32xf32> to vector<16xf32>
    %100 = vector.shape_cast %99 : vector<16xf32> to vector<16x1xf32>
    %cst_33 = arith.constant 3.200000e+01 : f32
    %101 = vector.broadcast %cst_33 : f32 to vector<16x1xf32>
    %102 = arith.divf %100, %101 : vector<16x1xf32>
    %103 = vector.broadcast %95 : vector<16x1xf32> to vector<16x32xf32>
    %104 = arith.subf %91, %103 : vector<16x32xf32>
    %cst_34 = arith.constant 9.99999996E-13 : f32
    %105 = vector.broadcast %cst_34 : f32 to vector<16x1xf32>
    %106 = arith.addf %102, %105 : vector<16x1xf32>
    %107 = math.rsqrt %106 : vector<16x1xf32>
    %108 = vector.broadcast %107 : vector<16x1xf32> to vector<16x32xf32>
    %109 = arith.mulf %104, %108 : vector<16x32xf32>
    %110 = vector.broadcast %16 : vector<1x32xf32> to vector<16x32xf32>
    %111 = arith.mulf %109, %110 : vector<16x32xf32>
    %112 = vector.broadcast %17 : vector<1x32xf32> to vector<16x32xf32>
    %113 = arith.addf %111, %112 : vector<16x32xf32>
    %114 = vector.shape_cast %113 : vector<16x32xf32> to vector<2x8x32xf32>
    %115 = vector.extract_strided_slice %114 {offsets = [0, 0, 0], sizes = [2, 1, 32], strides = [1, 1, 1]} : vector<2x8x32xf32> to vector<2x1x32xf32>
    %116 = vector.shape_cast %115 : vector<2x1x32xf32> to vector<2x32xf32>
    %cst_35 = arith.constant dense<0.000000e+00> : vector<2x32xf32>
    %117 = tpu.matmul %116, %7, %cst_35 {dimension_numbers = #tpu.dot_dimension_numbers<[1], [0], [0], [1], [0, 0, 1, 1], [], []>} : vector<2x32xf32>, vector<32x32xf32>, vector<2x32xf32> -> vector<2x32xf32>
    %118 = vector.broadcast %18 : vector<1x32xf32> to vector<2x32xf32>
    %119 = arith.addf %117, %118 : vector<2x32xf32>
    %120 = math.tanh %119 : vector<2x32xf32>
    %121 = tpu.concatenate %120, %3 in 1 : vector<2x32xf32>, vector<2x16xf32> -> vector<2x48xf32>
    %c0_36 = arith.constant 0 : index
    %c0_37 = arith.constant 0 : index
    %122 = vector.load %arg5[%c0_36, %c0_37] : memref<48x128xf32, #tpu.memory_space<vmem>>, vector<48x128xf32>
    %cst_38 = arith.constant dense<0.000000e+00> : vector<2x128xf32>
    %123 = tpu.matmul %121, %122, %cst_38 {dimension_numbers = #tpu.dot_dimension_numbers<[1], [0], [0], [1], [0, 0, 1, 1], [], []>} : vector<2x48xf32>, vector<48x128xf32>, vector<2x128xf32> -> vector<2x128xf32>
    %124 = vector.broadcast %19 : vector<1x128xf32> to vector<2x128xf32>
    %125 = arith.addf %123, %124 : vector<2x128xf32>
    %c0_39 = arith.constant 0 : index
    %c0_40 = arith.constant 0 : index
    %126 = vector.load %arg7[%c0_39, %c0_40] : memref<2x128xf32, #tpu.memory_space<vmem>>, vector<2x128xf32>
    tpu.vector_store %arg7[%c0_39, %c0_40], %125 {strides = array<i32>} : memref<2x128xf32, #tpu.memory_space<vmem>>, vector<2x128xf32>,
    return
  }
}

</mosaic_0001>

<llo_original>
// kernel: custom_model_forward.1
$region0: #{custom_model_forward.1}
  #allocation0 [shape = 'u32[]', space=smem, size = 0x4, offset = 0x4, fixed_abs, tag = 'smem constant byte address 0x4 - core index']
  #allocation1 [shape = 'u32[144,128]{1,0:T(1,128)}', space=vmem, size = 0x12000, scoped, tag = 'internal scratch']
  %s0 = inlined_call_operand.vmem [shape: f32[2,8,32], index: 0, kind: input, shape index: {}]
  %s1 = inlined_call_operand.vmem [shape: f32[2,1,8], index: 1, kind: input, shape index: {}]
  %s2 = inlined_call_operand.vmem [shape: f32[2,16], index: 2, kind: input, shape index: {}]
  %s3 = inlined_call_operand.vmem [shape: f32[32,288], index: 3, kind: input, shape index: {}]
  %s4 = inlined_call_operand.vmem [shape: f32[128,32], index: 4, kind: input, shape index: {}]
  %s5 = inlined_call_operand.vmem [shape: f32[48,128], index: 5, kind: input, shape index: {}]
  %s6 = inlined_call_operand.vmem [shape: f32[10,128], index: 6, kind: input, shape index: {}]
  %s7 = inlined_call_operand.hbm [shape: f32[2,128], index: 7, kind: output, shape index: {}]
  %s8 = sld [smem:[#allocation0]]
  $region38: #{custom_model_forward.1} parent=0
    _
  %s10 = ssub.s32 1, %s8
  %s11 = scalar_select 0, %s10, %s8
  $region1: #{custom_model_forward.1} parent=0
    #allocation2 [shape = 'u8[1024]{0}', space=vmem, size = 0x400, scoped, tag = 'output window, operand 0, single buffered']
    #allocation3 [shape = 's32[1]{0}', space=sflag, size = 0x4, scoped, tag = 'scoped memory for custom_model_forward.1']
    %12 = vsyncpa [#allocation3], 0
    // Predicated region
    $region2: #{custom_model_forward.1} parent=1 // pred_check
      _
    $region3: #{custom_model_forward.1} parent=1 // pred_check_branch
      %14 = sbr.rel (0) target = $region5
    $region4: #{custom_model_forward.1} parent=1 // pred_region
      _
    $region5: #{custom_model_forward.1} parent=1 // pred_fallthru
      _
    // Predicated region
    $region6: #{custom_model_forward.1} parent=1 // pred_check
      _
    $region7: #{custom_model_forward.1} parent=1 // pred_check_branch
      %16 = sbr.rel (0) target = $region9
    $region8: #{custom_model_forward.1} parent=1 // pred_region
      _
    $region9: #{custom_model_forward.1} parent=1 // pred_fallthru
      _
    // Predicated region
    $region10: #{custom_model_forward.1} parent=1 // pred_check
      _
    $region11: #{custom_model_forward.1} parent=1 // pred_check_branch
      %18 = sbr.rel (0) target = $region13
    $region12: #{custom_model_forward.1} parent=1 // pred_region
      _
    $region13: #{custom_model_forward.1} parent=1 // pred_fallthru
      _
    // Predicated region
    $region14: #{custom_model_forward.1} parent=1 // pred_check
      _
    $region15: #{custom_model_forward.1} parent=1 // pred_check_branch
      %20 = sbr.rel (0) target = $region17
    $region16: #{custom_model_forward.1} parent=1 // pred_region
      _
    $region17: #{custom_model_forward.1} parent=1 // pred_fallthru
      _
    // Predicated region
    $region18: #{custom_model_forward.1} parent=1 // pred_check
      _
    $region19: #{custom_model_forward.1} parent=1 // pred_check_branch
      %22 = sbr.rel (0) target = $region21
    $region20: #{custom_model_forward.1} parent=1 // pred_region
      _
    $region21: #{custom_model_forward.1} parent=1 // pred_fallthru
      _
    // Predicated region
    $region22: #{custom_model_forward.1} parent=1 // pred_check
      _
    $region23: #{custom_model_forward.1} parent=1 // pred_check_branch
      %24 = sbr.rel (0) target = $region25
    $region24: #{custom_model_forward.1} parent=1 // pred_region
      _
    $region25: #{custom_model_forward.1} parent=1 // pred_fallthru
      _
    // Predicated region
    $region26: #{custom_model_forward.1} parent=1 // pred_check
      _
    $region27: #{custom_model_forward.1} parent=1 // pred_check_branch
      %26 = sbr.rel (0) target = $region29
    $region28: #{custom_model_forward.1} parent=1 // pred_region
      _
    $region29: #{custom_model_forward.1} parent=1 // pred_fallthru
      _
    %v27 = vld [vmem:[%s0] sm:$0xff]
    %v28 = vld [vmem:[%s0 + $0x8] sm:$0xff]
    %v29 = vld [vmem:[%s1] sm:$0x1]
    %v30 = vld [vmem:[%s1 + $0x1] sm:$0x1]
    %v31 = vld [vmem:[%s2] sm:$0x3]
    %v32 = vld [vmem:[%s3] sm:$0xff]
    %v33 = vld [vmem:[%s3 + $0x8] sm:$0xff]
    %v34 = vld [vmem:[%s3 + $0x10] sm:$0xff]
    %v35 = vld [vmem:[%s3 + $0x18] sm:$0xff]
    %v36 = vld [vmem:[%s3 + $0x20] sm:$0xff]
    %v37 = vld [vmem:[%s3 + $0x28] sm:$0xff]
    %v38 = vld [vmem:[%s3 + $0x30] sm:$0xff]
    %v39 = vld [vmem:[%s3 + $0x38] sm:$0xff]
    %v40 = vld [vmem:[%s3 + $0x40] sm:$0xff]
    %v41 = vld [vmem:[%s3 + $0x48] sm:$0xff]
    %v42 = vld [vmem:[%s3 + $0x50] sm:$0xff]
    %v43 = vld [vmem:[%s3 + $0x58] sm:$0xff]
    %v44 = vld [vmem:[%s6] sm:$0xff]
    %v45 = vld [vmem:[%s6 + $0x8] sm:$0x3]
    %v46 = vlaneseq
    %v47 = vshrl.u32 %v46, 7
    %v48 = vsub.s32 0, %v47
    %v49 = vrot.slane %v44, %v48
    %vm50 = vcmask 261120
    %v52 = vsel %vm50, %v27, 0
    %v55 = vsel %vm50, %v28, 0
    %57 = vmatprep.subr.mxu0 0.0
    %58 = vmatpush1.msra.mxu0 %v32
    %59 = vmatprep.subr.mxu0 0.0
    %60 = vmatpush1.msra.mxu0 %v35
    %61 = vmatprep.subr.mxu0 0.0
    %62 = vmatpush1.msra.mxu0 %v38
    %63 = vmatprep.subr.mxu0 0.0
    %64 = vmatpush1.msra.mxu0 %v41
    %65 = vmatprep.subr.mxu0 0.0
    %66 = vmatpush1.msra.mxu0 0.0
    %67 = vmatprep.subr.mxu0 0.0
    %68 = vmatpush1.msra.mxu0 0.0
    %69 = vmatprep.subr.mxu0 0.0
    %70 = vmatpush1.msra.mxu0 0.0
    %71 = vmatprep.subr.mxu0 0.0
    %72 = vmatpush1.msra.mxu0 0.0
    %73 = vmatprep.subr.mxu0 0.0
    %74 = vmatpush1.msra.mxu0 0.0
    %75 = vmatprep.subr.mxu0 0.0
    %76 = vmatpush1.msra.mxu0 0.0
    %77 = vmatprep.subr.mxu0 0.0
    %78 = vmatpush1.msra.mxu0 0.0
    %79 = vmatprep.subr.mxu0 0.0
    %80 = vmatpush1.msra.mxu0 0.0
    %81 = vmatprep.subr.mxu0 0.0
    %82 = vmatpush1.msra.mxu0 0.0
    %83 = vmatprep.subr.mxu0 0.0
    %84 = vmatpush1.msra.mxu0 0.0
    %85 = vmatprep.subr.mxu0 0.0
    %86 = vmatpush1.msra.mxu0 0.0
    %87 = vmatprep.subr.mxu0 0.0
    %88 = vmatpush1.msra.mxu0 0.0
    %89 = vmatprep.subr.mxu0 0.0
    %90 = vmatpush1.msra.mxu0 0.0
    %91 = vmatprep.subr.mxu0 0.0
    %92 = vmatpush1.msra.mxu0 0.0
    %93 = vmatprep.subr.mxu0 0.0
    %94 = vmatpush1.msra.mxu0 0.0
    %95 = vmatprep.subr.mxu0 0.0
    %96 = vmatpush1.msra.mxu0 0.0
    %97 = vmatprep.subr.mxu0 0.0
    %98 = vmatpush1.msra.mxu0 0.0
    %99 = vmatprep.subr.mxu0 0.0
    %100 = vmatpush1.msra.mxu0 0.0
    %101 = vmatprep.subr.mxu0 0.0
    %102 = vmatpush1.msra.mxu0 0.0
    %103 = vmatprep.subr.mxu0 0.0
    %104 = vmatpush1.msra.mxu0 0.0
    %105 = vmatprep.subr.mxu0 0.0
    %106 = vmatpush1.msra.mxu0 0.0
    %107 = vmatprep.subr.mxu0 0.0
    %108 = vmatpush1.msra.mxu0 0.0
    %109 = vmatprep.subr.mxu0 0.0
    %110 = vmatpush1.msra.mxu0 0.0
    %111 = vmatprep.subr.mxu0 0.0
    %112 = vmatpush1.msra.mxu0 0.0
    %113 = vmatprep.subr.mxu0 0.0
    %114 = vmatpush1.msra.mxu0 0.0
    %115 = vmatprep.subr.mxu0 0.0
    %116 = vmatpush1.msra.mxu0 0.0
    %117 = vmatprep.subr.mxu0 0.0
    %118 = vmatpush1.msra.mxu0 0.0
    %119 = vmatprep.subr.mxu0 0.0
    %120 = vmatpush1.msra.mxu0 0.0
    %121 = vmatprep.mubr.f32.mxu0 0.0
    %122 = vmatmul.mubr.f32.gmra.mrb[0].mxu0 %v52
    %v123 = vpop.f32.mrb[0].mxu0
    %v124 = vadd.f32 %v49, %v123
    %v125 = vpop.f32.mrb[0].mxu0
    %126 = vmatprep.mubr.f32.mxu0 0.0
    %127 = vmatmul.mubr.f32.gmra.mrb[0].mxu0 %v55
    %v128 = vpop.f32.mrb[0].mxu0
    %v129 = vadd.f32 %v49, %v128
    %v130 = vpop.f32.mrb[0].mxu0
    %131 = vdwg.mxu0
    %133 = vrot.lane.b32.xlu0 %v124, 96
    %v134 = vpop.permute.xlu0 %133
    %v135 = vsel %vm50, %v124, 0
    %v137 = vsel %vm50, %v134, 0
    %139 = vmatprep.subr.mxu0 0.0
    %140 = vmatpush1.xpose.msra.mxu0 %v137
    %141 = vmatprep.subr.mxu0 0.0
    %142 = vmatpush1.xpose.msra.mxu0 0.0
    %143 = vmatprep.subr.mxu0 0.0
    %144 = vmatpush1.xpose.msra.mxu0 0.0
    %145 = vmatprep.subr.mxu0 0.0
    %146 = vmatpush1.xpose.msra.mxu0 0.0
    %147 = vmatprep.subr.mxu0 0.0
    %148 = vmatpush1.xpose.msra.mxu0 0.0
    %149 = vmatprep.subr.mxu0 0.0
    %150 = vmatpush1.xpose.msra.mxu0 0.0
    %151 = vmatprep.subr.mxu0 0.0
    %152 = vmatpush1.xpose.msra.mxu0 0.0
    %153 = vmatprep.subr.mxu0 0.0
    %154 = vmatpush1.xpose.msra.mxu0 0.0
    %155 = vmatprep.subr.mxu0 0.0
    %156 = vmatpush1.xpose.msra.mxu0 0.0
    %157 = vmatprep.subr.mxu0 0.0
    %158 = vmatpush1.xpose.msra.mxu0 0.0
    %159 = vmatprep.subr.mxu0 0.0
    %160 = vmatpush1.xpose.msra.mxu0 0.0
    %161 = vmatprep.subr.mxu0 0.0
    %162 = vmatpush1.xpose.msra.mxu0 0.0
    %163 = vmatprep.subr.mxu0 0.0
    %164 = vmatpush1.xpose.msra.mxu0 0.0
    %165 = vmatprep.subr.mxu0 0.0
    %166 = vmatpush1.xpose.msra.mxu0 0.0
    %167 = vmatprep.subr.mxu0 0.0
    %168 = vmatpush1.xpose.msra.mxu0 0.0
    %169 = vmatprep.subr.mxu0 0.0
    %170 = vmatpush1.xpose.msra.mxu0 0.0
    %171 = vmatprep.subr.mxu0 0.0
    %172 = vmatpush1.xpose.msra.mxu0 0.0
    %173 = vmatprep.subr.mxu0 0.0
    %174 = vmatpush1.xpose.msra.mxu0 0.0
    %175 = vmatprep.subr.mxu0 0.0
    %176 = vmatpush1.xpose.msra.mxu0 0.0
    %177 = vmatprep.subr.mxu0 0.0
    %178 = vmatpush1.xpose.msra.mxu0 0.0
    %179 = vmatprep.subr.mxu0 0.0
    %180 = vmatpush1.xpose.msra.mxu0 0.0
    %181 = vmatprep.subr.mxu0 0.0
    %182 = vmatpush1.xpose.msra.mxu0 0.0
    %183 = vmatprep.subr.mxu0 0.0
    %184 = vmatpush1.xpose.msra.mxu0 0.0
    %185 = vmatprep.subr.mxu0 0.0
    %186 = vmatpush1.xpose.msra.mxu0 0.0
    %187 = vmatprep.subr.mxu0 0.0
    %188 = vmatpush1.xpose.msra.mxu0 0.0
    %189 = vmatprep.subr.mxu0 0.0
    %190 = vmatpush1.xpose.msra.mxu0 0.0
    %191 = vmatprep.subr.mxu0 0.0
    %192 = vmatpush1.xpose.msra.mxu0 0.0
    %193 = vmatprep.subr.mxu0 0.0
    %194 = vmatpush1.xpose.msra.mxu0 0.0
    %195 = vmatprep.subr.mxu0 0.0
    %196 = vmatpush1.xpose.msra.mxu0 0.0
    %197 = vmatprep.subr.mxu0 0.0
    %198 = vmatpush1.xpose.msra.mxu0 0.0
    %199 = vmatprep.subr.mxu0 0.0
    %200 = vmatpush1.xpose.msra.mxu0 0.0
    %201 = vmatprep.subr.mxu0 0.0
    %202 = vmatpush1.xpose.msra.mxu0 0.0
    %203 = vmatprep.mubr.f32.mxu0 0.0
    %204 = vmatmul.mubr.f32.gmra.mrb[0].mxu0 %v135
    %v205 = vpop.f32.mrb[0].mxu0
    %v206 = vadd.f32 0.0, %v205
    %v207 = vpop.f32.mrb[0].mxu0
    %208 = vdwg.mxu0
    %210 = vrot.lane.b32.xlu0 %v129, 96
    %v211 = vpop.permute.xlu0 %210
    %v212 = vsel %vm50, %v129, 0
    %v214 = vsel %vm50, %v211, 0
    %216 = vmatprep.subr.mxu0 0.0
    %217 = vmatpush1.xpose.msra.mxu0 %v214
    %218 = vmatprep.subr.mxu0 0.0
    %219 = vmatpush1.xpose.msra.mxu0 0.0
    %220 = vmatprep.subr.mxu0 0.0
    %221 = vmatpush1.xpose.msra.mxu0 0.0
    %222 = vmatprep.subr.mxu0 0.0
    %223 = vmatpush1.xpose.msra.mxu0 0.0
    %224 = vmatprep.subr.mxu0 0.0
    %225 = vmatpush1.xpose.msra.mxu0 0.0
    %226 = vmatprep.subr.mxu0 0.0
    %227 = vmatpush1.xpose.msra.mxu0 0.0
    %228 = vmatprep.subr.mxu0 0.0
    %229 = vmatpush1.xpose.msra.mxu0 0.0
    %230 = vmatprep.subr.mxu0 0.0
    %231 = vmatpush1.xpose.msra.mxu0 0.0
    %232 = vmatprep.subr.mxu0 0.0
    %233 = vmatpush1.xpose.msra.mxu0 0.0
    %234 = vmatprep.subr.mxu0 0.0
    %235 = vmatpush1.xpose.msra.mxu0 0.0
    %236 = vmatprep.subr.mxu0 0.0
    %237 = vmatpush1.xpose.msra.mxu0 0.0
    %238 = vmatprep.subr.mxu0 0.0
    %239 = vmatpush1.xpose.msra.mxu0 0.0
    %240 = vmatprep.subr.mxu0 0.0
    %241 = vmatpush1.xpose.msra.mxu0 0.0
    %242 = vmatprep.subr.mxu0 0.0
    %243 = vmatpush1.xpose.msra.mxu0 0.0
    %244 = vmatprep.subr.mxu0 0.0
    %245 = vmatpush1.xpose.msra.mxu0 0.0
    %246 = vmatprep.subr.mxu0 0.0
    %247 = vmatpush1.xpose.msra.mxu0 0.0
    %248 = vmatprep.subr.mxu0 0.0
    %249 = vmatpush1.xpose.msra.mxu0 0.0
    %250 = vmatprep.subr.mxu0 0.0
    %251 = vmatpush1.xpose.msra.mxu0 0.0
    %252 = vmatprep.subr.mxu0 0.0
    %253 = vmatpush1.xpose.msra.mxu0 0.0
    %254 = vmatprep.subr.mxu0 0.0
    %255 = vmatpush1.xpose.msra.mxu0 0.0
    %256 = vmatprep.subr.mxu0 0.0
    %257 = vmatpush1.xpose.msra.mxu0 0.0
    %258 = vmatprep.subr.mxu0 0.0
    %259 = vmatpush1.xpose.msra.mxu0 0.0
    %260 = vmatprep.subr.mxu0 0.0
    %261 = vmatpush1.xpose.msra.mxu0 0.0
    %262 = vmatprep.subr.mxu0 0.0
    %263 = vmatpush1.xpose.msra.mxu0 0.0
    %264 = vmatprep.subr.mxu0 0.0
    %265 = vmatpush1.xpose.msra.mxu0 0.0
    %266 = vmatprep.subr.mxu0 0.0
    %267 = vmatpush1.xpose.msra.mxu0 0.0
    %268 = vmatprep.subr.mxu0 0.0
    %269 = vmatpush1.xpose.msra.mxu0 0.0
    %270 = vmatprep.subr.mxu0 0.0
    %271 = vmatpush1.xpose.msra.mxu0 0.0
    %272 = vmatprep.subr.mxu0 0.0
    %273 = vmatpush1.xpose.msra.mxu0 0.0
    %274 = vmatprep.subr.mxu0 0.0
    %275 = vmatpush1.xpose.msra.mxu0 0.0
    %276 = vmatprep.subr.mxu0 0.0
    %277 = vmatpush1.xpose.msra.mxu0 0.0
    %278 = vmatprep.subr.mxu0 0.0
    %279 = vmatpush1.xpose.msra.mxu0 0.0
    %280 = vmatprep.mubr.f32.mxu0 0.0
    %281 = vmatmul.mubr.f32.gmra.mrb[0].mxu0 %v212
    %v282 = vpop.f32.mrb[0].mxu0
    %v283 = vadd.f32 0.0, %v282
    %v284 = vpop.f32.mrb[0].mxu0
    %285 = vdwg.mxu0
    %v286 = vmul.f32 %v206, 0.17677669
    %v287 = vmul.f32 %v283, 0.17677669
    %v290 = vlaneseq
    %v291 = vshrl.u32 %v290, 7
    %v292 = vsub.s32 0, %v291
    %v293 = vrot.slane %v29, %v292
    %v294 = vlaneseq
    %v295 = vshrl.u32 %v294, 7
    %v296 = vsub.s32 0, %v295
    %v297 = vrot.slane %v30, %v296
    %v300 = vadd.f32 %v286, %v293
    %v301 = vadd.f32 %v287, %v297
    %vm302 = vcmask 64512
    %v303 = vsel %vm302, %v300, -inf
    %304 = vmax.xlane.f32.xlu0 %v303
    %v305 = vpop.xlane.xlu0 %304
    %v306 = vsel %vm302, %v301, -inf
    %307 = vmax.xlane.f32.xlu0 %v306
    %v308 = vpop.xlane.xlu0 %307
    %v309 = vsub.f32 %v300, %v305
    %v310 = vsub.f32 %v301, %v308
    %v311 = vmul.f32 %v309, 1.442695
    %v312 = vpow.pop %v311
    %v313 = vmul.f32 %v310, 1.442695
    %v314 = vpow.pop %v313
    %v315 = vsel %vm302, %v312, 0.0
    %316 = vadd.xlane.f32.xlu0 %v315
    %v317 = vpop.xlane.xlu0 %316
    %v318 = vsel %vm302, %v314, 0.0
    %319 = vadd.xlane.f32.xlu0 %v318
    %v320 = vpop.xlane.xlu0 %319
    %v321 = vrcp.pop %v317
    %v322 = vmul.f32 %v312, %v321
    %v323 = vrcp.pop %v320
    %v324 = vmul.f32 %v314, %v323
    %325 = vrot.lane.b32.xlu0 %v124, 64
    %v326 = vpop.permute.xlu0 %325
    %v329 = vsel %vm302, %v322, 0
    %331 = vmatprep.subr.mxu0 0.0
    %332 = vmatpush1.msra.mxu0 %v326
    %333 = vmatprep.subr.mxu0 0.0
    %334 = vmatpush1.msra.mxu0 0.0
    %335 = vmatprep.subr.mxu0 0.0
    %336 = vmatpush1.msra.mxu0 0.0
    %337 = vmatprep.subr.mxu0 0.0
    %338 = vmatpush1.msra.mxu0 0.0
    %339 = vmatprep.subr.mxu0 0.0
    %340 = vmatpush1.msra.mxu0 0.0
    %341 = vmatprep.subr.mxu0 0.0
    %342 = vmatpush1.msra.mxu0 0.0
    %343 = vmatprep.subr.mxu0 0.0
    %344 = vmatpush1.msra.mxu0 0.0
    %345 = vmatprep.subr.mxu0 0.0
    %346 = vmatpush1.msra.mxu0 0.0
    %347 = vmatprep.subr.mxu0 0.0
    %348 = vmatpush1.msra.mxu0 0.0
    %349 = vmatprep.subr.mxu0 0.0
    %350 = vmatpush1.msra.mxu0 0.0
    %351 = vmatprep.subr.mxu0 0.0
    %352 = vmatpush1.msra.mxu0 0.0
    %353 = vmatprep.subr.mxu0 0.0
    %354 = vmatpush1.msra.mxu0 0.0
    %355 = vmatprep.subr.mxu0 0.0
    %356 = vmatpush1.msra.mxu0 0.0
    %357 = vmatprep.subr.mxu0 0.0
    %358 = vmatpush1.msra.mxu0 0.0
    %359 = vmatprep.subr.mxu0 0.0
    %360 = vmatpush1.msra.mxu0 0.0
    %361 = vmatprep.subr.mxu0 0.0
    %362 = vmatpush1.msra.mxu0 0.0
    %363 = vmatprep.subr.mxu0 0.0
    %364 = vmatpush1.msra.mxu0 0.0
    %365 = vmatprep.subr.mxu0 0.0
    %366 = vmatpush1.msra.mxu0 0.0
    %367 = vmatprep.subr.mxu0 0.0
    %368 = vmatpush1.msra.mxu0 0.0
    %369 = vmatprep.subr.mxu0 0.0
    %370 = vmatpush1.msra.mxu0 0.0
    %371 = vmatprep.subr.mxu0 0.0
    %372 = vmatpush1.msra.mxu0 0.0
    %373 = vmatprep.subr.mxu0 0.0
    %374 = vmatpush1.msra.mxu0 0.0
    %375 = vmatprep.subr.mxu0 0.0
    %376 = vmatpush1.msra.mxu0 0.0
    %377 = vmatprep.subr.mxu0 0.0
    %378 = vmatpush1.msra.mxu0 0.0
    %379 = vmatprep.subr.mxu0 0.0
    %380 = vmatpush1.msra.mxu0 0.0
    %381 = vmatprep.subr.mxu0 0.0
    %382 = vmatpush1.msra.mxu0 0.0
    %383 = vmatprep.subr.mxu0 0.0
    %384 = vmatpush1.msra.mxu0 0.0
    %385 = vmatprep.subr.mxu0 0.0
    %386 = vmatpush1.msra.mxu0 0.0
    %387 = vmatprep.subr.mxu0 0.0
    %388 = vmatpush1.msra.mxu0 0.0
    %389 = vmatprep.subr.mxu0 0.0
    %390 = vmatpush1.msra.mxu0 0.0
    %391 = vmatprep.subr.mxu0 0.0
    %392 = vmatpush1.msra.mxu0 0.0
    %393 = vmatprep.subr.mxu0 0.0
    %394 = vmatpush1.msra.mxu0 0.0
    %395 = vmatprep.mubr.f32.mxu0 0.0
    %396 = vmatmul.mubr.f32.gmra.mrb[0].mxu0 %v329
    %v397 = vpop.f32.mrb[0].mxu0
    %v398 = vadd.f32 0.0, %v397
    %v399 = vpop.f32.mrb[0].mxu0
    %400 = vdwg.mxu0
    %401 = vrot.lane.b32.xlu0 %v129, 64
    %v402 = vpop.permute.xlu0 %401
    %v405 = vsel %vm302, %v324, 0
    %407 = vmatprep.subr.mxu0 0.0
    %408 = vmatpush1.msra.mxu0 %v402
    %409 = vmatprep.subr.mxu0 0.0
    %410 = vmatpush1.msra.mxu0 0.0
    %411 = vmatprep.subr.mxu0 0.0
    %412 = vmatpush1.msra.mxu0 0.0
    %413 = vmatprep.subr.mxu0 0.0
    %414 = vmatpush1.msra.mxu0 0.0
    %415 = vmatprep.subr.mxu0 0.0
    %416 = vmatpush1.msra.mxu0 0.0
    %417 = vmatprep.subr.mxu0 0.0
    %418 = vmatpush1.msra.mxu0 0.0
    %419 = vmatprep.subr.mxu0 0.0
    %420 = vmatpush1.msra.mxu0 0.0
    %421 = vmatprep.subr.mxu0 0.0
    %422 = vmatpush1.msra.mxu0 0.0
    %423 = vmatprep.subr.mxu0 0.0
    %424 = vmatpush1.msra.mxu0 0.0
    %425 = vmatprep.subr.mxu0 0.0
    %426 = vmatpush1.msra.mxu0 0.0
    %427 = vmatprep.subr.mxu0 0.0
    %428 = vmatpush1.msra.mxu0 0.0
    %429 = vmatprep.subr.mxu0 0.0
    %430 = vmatpush1.msra.mxu0 0.0
    %431 = vmatprep.subr.mxu0 0.0
    %432 = vmatpush1.msra.mxu0 0.0
    %433 = vmatprep.subr.mxu0 0.0
    %434 = vmatpush1.msra.mxu0 0.0
    %435 = vmatprep.subr.mxu0 0.0
    %436 = vmatpush1.msra.mxu0 0.0
    %437 = vmatprep.subr.mxu0 0.0
    %438 = vmatpush1.msra.mxu0 0.0
    %439 = vmatprep.subr.mxu0 0.0
    %440 = vmatpush1.msra.mxu0 0.0
    %441 = vmatprep.subr.mxu0 0.0
    %442 = vmatpush1.msra.mxu0 0.0
    %443 = vmatprep.subr.mxu0 0.0
    %444 = vmatpush1.msra.mxu0 0.0
    %445 = vmatprep.subr.mxu0 0.0
    %446 = vmatpush1.msra.mxu0 0.0
    %447 = vmatprep.subr.mxu0 0.0
    %448 = vmatpush1.msra.mxu0 0.0
    %449 = vmatprep.subr.mxu0 0.0
    %450 = vmatpush1.msra.mxu0 0.0
    %451 = vmatprep.subr.mxu0 0.0
    %452 = vmatpush1.msra.mxu0 0.0
    %453 = vmatprep.subr.mxu0 0.0
    %454 = vmatpush1.msra.mxu0 0.0
    %455 = vmatprep.subr.mxu0 0.0
    %456 = vmatpush1.msra.mxu0 0.0
    %457 = vmatprep.subr.mxu0 0.0
    %458 = vmatpush1.msra.mxu0 0.0
    %459 = vmatprep.subr.mxu0 0.0
    %460 = vmatpush1.msra.mxu0 0.0
    %461 = vmatprep.subr.mxu0 0.0
    %462 = vmatpush1.msra.mxu0 0.0
    %463 = vmatprep.subr.mxu0 0.0
    %464 = vmatpush1.msra.mxu0 0.0
    %465 = vmatprep.subr.mxu0 0.0
    %466 = vmatpush1.msra.mxu0 0.0
    %467 = vmatprep.subr.mxu0 0.0
    %468 = vmatpush1.msra.mxu0 0.0
    %469 = vmatprep.subr.mxu0 0.0
    %470 = vmatpush1.msra.mxu0 0.0
    %471 = vmatprep.mubr.f32.mxu0 0.0
    %472 = vmatmul.mubr.f32.gmra.mrb[0].mxu0 %v405
    %v473 = vpop.f32.mrb[0].mxu0
    %v474 = vadd.f32 0.0, %v473
    %v475 = vpop.f32.mrb[0].mxu0
    %476 = vdwg.mxu0
    %v477 = vlaneseq
    %v478 = vshrl.u32 %v477, 7
    %v479 = vsub.s32 1, %v478
    %v480 = vrot.slane %v44, %v479
    %485 = vrot.lane.b32.xlu0 %v32, 32
    %v486 = vpop.permute.xlu0 %485
    %487 = vrot.lane.b32.xlu0 %v35, 32
    %v488 = vpop.permute.xlu0 %487
    %489 = vrot.lane.b32.xlu0 %v38, 32
    %v490 = vpop.permute.xlu0 %489
    %491 = vrot.lane.b32.xlu0 %v41, 32
    %v492 = vpop.permute.xlu0 %491
    %v498 = vsel %vm50, %v398, 0
    %v501 = vsel %vm50, %v474, 0
    %503 = vmatprep.subr.mxu0 0.0
    %504 = vmatpush1.msra.mxu0 %v486
    %505 = vmatprep.subr.mxu0 0.0
    %506 = vmatpush1.msra.mxu0 %v488
    %507 = vmatprep.subr.mxu0 0.0
    %508 = vmatpush1.msra.mxu0 %v490
    %509 = vmatprep.subr.mxu0 0.0
    %510 = vmatpush1.msra.mxu0 %v492
    %511 = vmatprep.subr.mxu0 0.0
    %512 = vmatpush1.msra.mxu0 0.0
    %513 = vmatprep.subr.mxu0 0.0
    %514 = vmatpush1.msra.mxu0 0.0
    %515 = vmatprep.subr.mxu0 0.0
    %516 = vmatpush1.msra.mxu0 0.0
    %517 = vmatprep.subr.mxu0 0.0
    %518 = vmatpush1.msra.mxu0 0.0
    %519 = vmatprep.subr.mxu0 0.0
    %520 = vmatpush1.msra.mxu0 0.0
    %521 = vmatprep.subr.mxu0 0.0
    %522 = vmatpush1.msra.mxu0 0.0
    %523 = vmatprep.subr.mxu0 0.0
    %524 = vmatpush1.msra.mxu0 0.0
    %525 = vmatprep.subr.mxu0 0.0
    %526 = vmatpush1.msra.mxu0 0.0
    %527 = vmatprep.subr.mxu0 0.0
    %528 = vmatpush1.msra.mxu0 0.0
    %529 = vmatprep.subr.mxu0 0.0
    %530 = vmatpush1.msra.mxu0 0.0
    %531 = vmatprep.subr.mxu0 0.0
    %532 = vmatpush1.msra.mxu0 0.0
    %533 = vmatprep.subr.mxu0 0.0
    %534 = vmatpush1.msra.mxu0 0.0
    %535 = vmatprep.subr.mxu0 0.0
    %536 = vmatpush1.msra.mxu0 0.0
    %537 = vmatprep.subr.mxu0 0.0
    %538 = vmatpush1.msra.mxu0 0.0
    %539 = vmatprep.subr.mxu0 0.0
    %540 = vmatpush1.msra.mxu0 0.0
    %541 = vmatprep.subr.mxu0 0.0
    %542 = vmatpush1.msra.mxu0 0.0
    %543 = vmatprep.subr.mxu0 0.0
    %544 = vmatpush1.msra.mxu0 0.0
    %545 = vmatprep.subr.mxu0 0.0
    %546 = vmatpush1.msra.mxu0 0.0
    %547 = vmatprep.subr.mxu0 0.0
    %548 = vmatpush1.msra.mxu0 0.0
    %549 = vmatprep.subr.mxu0 0.0
    %550 = vmatpush1.msra.mxu0 0.0
    %551 = vmatprep.subr.mxu0 0.0
    %552 = vmatpush1.msra.mxu0 0.0
    %553 = vmatprep.subr.mxu0 0.0
    %554 = vmatpush1.msra.mxu0 0.0
    %555 = vmatprep.subr.mxu0 0.0
    %556 = vmatpush1.msra.mxu0 0.0
    %557 = vmatprep.subr.mxu0 0.0
    %558 = vmatpush1.msra.mxu0 0.0
    %559 = vmatprep.subr.mxu0 0.0
    %560 = vmatpush1.msra.mxu0 0.0
    %561 = vmatprep.subr.mxu0 0.0
    %562 = vmatpush1.msra.mxu0 0.0
    %563 = vmatprep.subr.mxu0 0.0
    %564 = vmatpush1.msra.mxu0 0.0
    %565 = vmatprep.subr.mxu0 0.0
    %566 = vmatpush1.msra.mxu0 0.0
    %567 = vmatprep.mubr.f32.mxu0 0.0
    %568 = vmatmul.mubr.f32.gmra.mrb[0].mxu0 %v498
    %v569 = vpop.f32.mrb[0].mxu0
    %v570 = vadd.f32 %v480, %v569
    %v571 = vpop.f32.mrb[0].mxu0
    %572 = vmatprep.mubr.f32.mxu0 0.0
    %573 = vmatmul.mubr.f32.gmra.mrb[0].mxu0 %v501
    %v574 = vpop.f32.mrb[0].mxu0
    %v575 = vadd.f32 %v480, %v574
    %v576 = vpop.f32.mrb[0].mxu0
    %577 = vdwg.mxu0
    %v578 = vadd.f32 %v27, %v570
    %v579 = vadd.f32 %v28, %v575
    %v580 = vsel %vm50, %v578, 0.0
    %581 = vadd.xlane.f32.xlu0 %v580
    %v582 = vpop.xlane.xlu0 %581
    %v583 = vsel %vm50, %v579, 0.0
    %584 = vadd.xlane.f32.xlu0 %v583
    %v585 = vpop.xlane.xlu0 %584
    %v586 = vrcp.pop 32.0
    %v587 = vmul.f32 %v582, %v586
    %v588 = vmul.f32 %v585, %v586
    %v589 = vsub.f32 %v578, %v587
    %v590 = vsub.f32 %v579, %v588
    %v591 = vmul.f32 %v589, %v589
    %v592 = vmul.f32 %v590, %v590
    %v593 = vsel %vm50, %v591, 0.0
    %594 = vadd.xlane.f32.xlu0 %v593
    %v595 = vpop.xlane.xlu0 %594
    %v596 = vsel %vm50, %v592, 0.0
    %597 = vadd.xlane.f32.xlu0 %v596
    %v598 = vpop.xlane.xlu0 %597
    %v599 = vmul.f32 %v595, %v586
    %v600 = vmul.f32 %v598, %v586
    %v601 = vadd.f32 %v599, 1e-12
    %v602 = vadd.f32 %v600, 1e-12
    %v603 = vrsqrt.pop %v601
    %v604 = vrsqrt.pop %v602
    %v605 = vmul.f32 %v589, %v603
    %v606 = vmul.f32 %v590, %v604
    %v607 = vlaneseq
    %v608 = vshrl.u32 %v607, 7
    %v609 = vsub.s32 2, %v608
    %v610 = vrot.slane %v44, %v609
    %v611 = vmul.f32 %v605, %v610
    %v612 = vmul.f32 %v606, %v610
    %v613 = vlaneseq
    %v614 = vshrl.u32 %v613, 7
    %v615 = vsub.s32 3, %v614
    %v616 = vrot.slane %v44, %v615
    %v617 = vadd.f32 %v611, %v616
    %v618 = vadd.f32 %v612, %v616
    %v619 = vlaneseq
    %v620 = vshrl.u32 %v619, 7
    %v621 = vsub.s32 4, %v620
    %v622 = vrot.slane %v44, %v621
    %631 = vrot.lane.b32.xlu0 %v33, 96
    %v632 = vpop.permute.xlu0 %631
    %633 = vrot.lane.b32.xlu0 %v34, 96
    %v634 = vpop.permute.xlu0 %633
    %635 = vrot.lane.b32.xlu0 %v36, 96
    %v636 = vpop.permute.xlu0 %635
    %637 = vrot.lane.b32.xlu0 %v37, 96
    %v638 = vpop.permute.xlu0 %637
    %639 = vrot.lane.b32.xlu0 %v39, 96
    %v640 = vpop.permute.xlu0 %639
    %641 = vrot.lane.b32.xlu0 %v40, 96
    %v642 = vpop.permute.xlu0 %641
    %643 = vrot.lane.b32.xlu0 %v42, 96
    %v644 = vpop.permute.xlu0 %643
    %645 = vrot.lane.b32.xlu0 %v43, 96
    %v646 = vpop.permute.xlu0 %645
    %vm647 = vcmask 785408
    %v648 = vsel %vm647, %v632, %v634
    %v649 = vsel %vm647, %v636, %v638
    %v650 = vsel %vm647, %v640, %v642
    %v651 = vsel %vm647, %v644, %v646
    %v657 = vsel %vm50, %v617, 0
    %v660 = vsel %vm50, %v618, 0
    %662 = vmatprep.subr.mxu0 0.0
    %663 = vmatpush1.msra.mxu0 %v648
    %664 = vmatprep.subr.mxu0 0.0
    %665 = vmatpush1.msra.mxu0 %v649
    %666 = vmatprep.subr.mxu0 0.0
    %667 = vmatpush1.msra.mxu0 %v650
    %668 = vmatprep.subr.mxu0 0.0
    %669 = vmatpush1.msra.mxu0 %v651
    %670 = vmatprep.subr.mxu0 0.0
    %671 = vmatpush1.msra.mxu0 0.0
    %672 = vmatprep.subr.mxu0 0.0
    %673 = vmatpush1.msra.mxu0 0.0
    %674 = vmatprep.subr.mxu0 0.0
    %675 = vmatpush1.msra.mxu0 0.0
    %676 = vmatprep.subr.mxu0 0.0
    %677 = vmatpush1.msra.mxu0 0.0
    %678 = vmatprep.subr.mxu0 0.0
    %679 = vmatpush1.msra.mxu0 0.0
    %680 = vmatprep.subr.mxu0 0.0
    %681 = vmatpush1.msra.mxu0 0.0
    %682 = vmatprep.subr.mxu0 0.0
    %683 = vmatpush1.msra.mxu0 0.0
    %684 = vmatprep.subr.mxu0 0.0
    %685 = vmatpush1.msra.mxu0 0.0
    %686 = vmatprep.subr.mxu0 0.0
    %687 = vmatpush1.msra.mxu0 0.0
    %688 = vmatprep.subr.mxu0 0.0
    %689 = vmatpush1.msra.mxu0 0.0
    %690 = vmatprep.subr.mxu0 0.0
    %691 = vmatpush1.msra.mxu0 0.0
    %692 = vmatprep.subr.mxu0 0.0
    %693 = vmatpush1.msra.mxu0 0.0
    %694 = vmatprep.subr.mxu0 0.0
    %695 = vmatpush1.msra.mxu0 0.0
    %696 = vmatprep.subr.mxu0 0.0
    %697 = vmatpush1.msra.mxu0 0.0
    %698 = vmatprep.subr.mxu0 0.0
    %699 = vmatpush1.msra.mxu0 0.0
    %700 = vmatprep.subr.mxu0 0.0
    %701 = vmatpush1.msra.mxu0 0.0
    %702 = vmatprep.subr.mxu0 0.0
    %703 = vmatpush1.msra.mxu0 0.0
    %704 = vmatprep.subr.mxu0 0.0
    %705 = vmatpush1.msra.mxu0 0.0
    %706 = vmatprep.subr.mxu0 0.0
    %707 = vmatpush1.msra.mxu0 0.0
    %708 = vmatprep.subr.mxu0 0.0
    %709 = vmatpush1.msra.mxu0 0.0
    %710 = vmatprep.subr.mxu0 0.0
    %711 = vmatpush1.msra.mxu0 0.0
    %712 = vmatprep.subr.mxu0 0.0
    %713 = vmatpush1.msra.mxu0 0.0
    %714 = vmatprep.subr.mxu0 0.0
    %715 = vmatpush1.msra.mxu0 0.0
    %716 = vmatprep.subr.mxu0 0.0
    %717 = vmatpush1.msra.mxu0 0.0
    %718 = vmatprep.subr.mxu0 0.0
    %719 = vmatpush1.msra.mxu0 0.0
    %720 = vmatprep.subr.mxu0 0.0
    %721 = vmatpush1.msra.mxu0 0.0
    %722 = vmatprep.subr.mxu0 0.0
    %723 = vmatpush1.msra.mxu0 0.0
    %724 = vmatprep.subr.mxu0 0.0
    %725 = vmatpush1.msra.mxu0 0.0
    %726 = vmatprep.mubr.f32.mxu0 0.0
    %727 = vmatmul.mubr.f32.gmra.mrb[0].mxu0 %v657
    %v728 = vpop.f32.mrb[0].mxu0
    %v729 = vadd.f32 %v622, %v728
    %v730 = vpop.f32.mrb[0].mxu0
    %731 = vmatprep.mubr.f32.mxu0 0.0
    %732 = vmatmul.mubr.f32.gmra.mrb[0].mxu0 %v660
    %v733 = vpop.f32.mrb[0].mxu0
    %v734 = vadd.f32 %v622, %v733
    %v735 = vpop.f32.mrb[0].mxu0
    %736 = vdwg.mxu0
    %v737 = vmul.f32 %v729, 0.5
    %v738 = vmul.f32 %v734, 0.5
    %v739 = vmul.f32 %v729, 0.044715
    %v740 = vmul.f32 %v734, 0.044715
    %v741 = vmul.f32 %v739, %v729
    %v742 = vmul.f32 %v740, %v734
    %v743 = vmul.f32 %v741, %v729
    %v744 = vmul.f32 %v742, %v734
    %v745 = vadd.f32 %v729, %v743
    %v746 = vadd.f32 %v734, %v744
    %v747 = vmul.f32 %v745, 0.7978846
    %v748 = vmul.f32 %v746, 0.7978846
    %v749 = vtanh.pop %v747
    %v750 = vtanh.pop %v748
    %v751 = vadd.f32 %v749, 1.0
    %v752 = vadd.f32 %v750, 1.0
    %v753 = vmul.f32 %v737, %v751
    %v754 = vmul.f32 %v738, %v752
    %v755 = vld [vmem:[%s4] sm:$0xff]
    %v756 = vld [vmem:[%s4 + $0x8] sm:$0xff]
    %v757 = vld [vmem:[%s4 + $0x10] sm:$0xff]
    %v758 = vld [vmem:[%s4 + $0x18] sm:$0xff]
    %v759 = vld [vmem:[%s4 + $0x20] sm:$0xff]
    %v760 = vld [vmem:[%s4 + $0x28] sm:$0xff]
    %v761 = vld [vmem:[%s4 + $0x30] sm:$0xff]
    %v762 = vld [vmem:[%s4 + $0x38] sm:$0xff]
    %v763 = vld [vmem:[%s4 + $0x40] sm:$0xff]
    %v764 = vld [vmem:[%s4 + $0x48] sm:$0xff]
    %v765 = vld [vmem:[%s4 + $0x50] sm:$0xff]
    %v766 = vld [vmem:[%s4 + $0x58] sm:$0xff]
    %v767 = vld [vmem:[%s4 + $0x60] sm:$0xff]
    %v768 = vld [vmem:[%s4 + $0x68] sm:$0xff]
    %v769 = vld [vmem:[%s4 + $0x70] sm:$0xff]
    %v770 = vld [vmem:[%s4 + $0x78] sm:$0xff]
    %v771 = vlaneseq
    %v772 = vshrl.u32 %v771, 7
    %v773 = vsub.s32 5, %v772
    %v774 = vrot.slane %v44, %v773
    %775 = vmatprep.subr.mxu0 0.0
    %776 = vmatpush1.msra.mxu0 %v755
    %777 = vmatprep.subr.mxu0 0.0
    %778 = vmatpush1.msra.mxu0 %v756
    %779 = vmatprep.subr.mxu0 0.0
    %780 = vmatpush1.msra.mxu0 %v757
    %781 = vmatprep.subr.mxu0 0.0
    %782 = vmatpush1.msra.mxu0 %v758
    %783 = vmatprep.subr.mxu0 0.0
    %784 = vmatpush1.msra.mxu0 %v759
    %785 = vmatprep.subr.mxu0 0.0
    %786 = vmatpush1.msra.mxu0 %v760
    %787 = vmatprep.subr.mxu0 0.0
    %788 = vmatpush1.msra.mxu0 %v761
    %789 = vmatprep.subr.mxu0 0.0
    %790 = vmatpush1.msra.mxu0 %v762
    %791 = vmatprep.subr.mxu0 0.0
    %792 = vmatpush1.msra.mxu0 %v763
    %793 = vmatprep.subr.mxu0 0.0
    %794 = vmatpush1.msra.mxu0 %v764
    %795 = vmatprep.subr.mxu0 0.0
    %796 = vmatpush1.msra.mxu0 %v765
    %797 = vmatprep.subr.mxu0 0.0
    %798 = vmatpush1.msra.mxu0 %v766
    %799 = vmatprep.subr.mxu0 0.0
    %800 = vmatpush1.msra.mxu0 %v767
    %801 = vmatprep.subr.mxu0 0.0
    %802 = vmatpush1.msra.mxu0 %v768
    %803 = vmatprep.subr.mxu0 0.0
    %804 = vmatpush1.msra.mxu0 %v769
    %805 = vmatprep.subr.mxu0 0.0
    %806 = vmatpush1.msra.mxu0 %v770
    %807 = vmatprep.subr.mxu0 0.0
    %808 = vmatpush1.msra.mxu0 0.0
    %809 = vmatprep.subr.mxu0 0.0
    %810 = vmatpush1.msra.mxu0 0.0
    %811 = vmatprep.subr.mxu0 0.0
    %812 = vmatpush1.msra.mxu0 0.0
    %813 = vmatprep.subr.mxu0 0.0
    %814 = vmatpush1.msra.mxu0 0.0
    %815 = vmatprep.subr.mxu0 0.0
    %816 = vmatpush1.msra.mxu0 0.0
    %817 = vmatprep.subr.mxu0 0.0
    %818 = vmatpush1.msra.mxu0 0.0
    %819 = vmatprep.subr.mxu0 0.0
    %820 = vmatpush1.msra.mxu0 0.0
    %821 = vmatprep.subr.mxu0 0.0
    %822 = vmatpush1.msra.mxu0 0.0
    %823 = vmatprep.subr.mxu0 0.0
    %824 = vmatpush1.msra.mxu0 0.0
    %825 = vmatprep.subr.mxu0 0.0
    %826 = vmatpush1.msra.mxu0 0.0
    %827 = vmatprep.subr.mxu0 0.0
    %828 = vmatpush1.msra.mxu0 0.0
    %829 = vmatprep.subr.mxu0 0.0
    %830 = vmatpush1.msra.mxu0 0.0
    %831 = vmatprep.subr.mxu0 0.0
    %832 = vmatpush1.msra.mxu0 0.0
    %833 = vmatprep.subr.mxu0 0.0
    %834 = vmatpush1.msra.mxu0 0.0
    %835 = vmatprep.subr.mxu0 0.0
    %836 = vmatpush1.msra.mxu0 0.0
    %837 = vmatprep.subr.mxu0 0.0
    %838 = vmatpush1.msra.mxu0 0.0
    %839 = vmatprep.mubr.f32.mxu0 0.0
    %840 = vmatmul.mubr.f32.gmra.mrb[0].mxu0 %v753
    %v841 = vpop.f32.mrb[0].mxu0
    %v842 = vadd.f32 %v774, %v841
    %v843 = vpop.f32.mrb[0].mxu0
    %844 = vmatprep.mubr.f32.mxu0 0.0
    %845 = vmatmul.mubr.f32.gmra.mrb[0].mxu0 %v754
    %v846 = vpop.f32.mrb[0].mxu0
    %v847 = vadd.f32 %v774, %v846
    %v848 = vpop.f32.mrb[0].mxu0
    %849 = vdwg.mxu0
    %v850 = vadd.f32 %v617, %v842
    %v851 = vadd.f32 %v618, %v847
    %v852 = vsel %vm50, %v850, 0.0
    %853 = vadd.xlane.f32.xlu0 %v852
    %v854 = vpop.xlane.xlu0 %853
    %v855 = vsel %vm50, %v851, 0.0
    %856 = vadd.xlane.f32.xlu0 %v855
    %v857 = vpop.xlane.xlu0 %856
    %v858 = vmul.f32 %v854, %v586
    %v859 = vmul.f32 %v857, %v586
    %v860 = vsub.f32 %v850, %v858
    %v861 = vsub.f32 %v851, %v859
    %v862 = vmul.f32 %v860, %v860
    %v863 = vmul.f32 %v861, %v861
    %v864 = vsel %vm50, %v862, 0.0
    %865 = vadd.xlane.f32.xlu0 %v864
    %v866 = vpop.xlane.xlu0 %865
    %v867 = vsel %vm50, %v863, 0.0
    %868 = vadd.xlane.f32.xlu0 %v867
    %v869 = vpop.xlane.xlu0 %868
    %v870 = vmul.f32 %v866, %v586
    %v871 = vmul.f32 %v869, %v586
    %v872 = vadd.f32 %v870, 1e-12
    %v873 = vadd.f32 %v871, 1e-12
    %v874 = vrsqrt.pop %v872
    %v875 = vrsqrt.pop %v873
    %v876 = vmul.f32 %v860, %v874
    %v877 = vmul.f32 %v861, %v875
    %v878 = vlaneseq
    %v879 = vshrl.u32 %v878, 7
    %v880 = vsub.s32 6, %v879
    %v881 = vrot.slane %v44, %v880
    %v882 = vmul.f32 %v876, %v881
    %v883 = vmul.f32 %v877, %v881
    %v884 = vlaneseq
    %v885 = vshrl.u32 %v884, 7
    %v886 = vsub.s32 7, %v885
    %v887 = vrot.slane %v44, %v886
    %v888 = vadd.f32 %v882, %v887
    %v889 = vadd.f32 %v883, %v887
    %v890 = vlaneseq
    %v891 = vshrl.u32 %v890, 7
    %v892 = vsub.s32 0, %v891
    %v893 = vrot.slane %v45, %v892
    %v896 = vrot.slane %v889, 7
    %vm897 = vcmask 1041409
    %v898 = vsel %vm897, %v896, %v888
    %v899 = vsel %vm50, %v898, 0
    %901 = vmatprep.subr.mxu0 0.0
    %902 = vmatpush1.msra.mxu0 %v33
    %903 = vmatprep.subr.mxu0 0.0
    %904 = vmatpush1.msra.mxu0 %v36
    %905 = vmatprep.subr.mxu0 0.0
    %906 = vmatpush1.msra.mxu0 %v39
    %907 = vmatprep.subr.mxu0 0.0
    %908 = vmatpush1.msra.mxu0 %v42
    %909 = vmatprep.subr.mxu0 0.0
    %910 = vmatpush1.msra.mxu0 0.0
    %911 = vmatprep.subr.mxu0 0.0
    %912 = vmatpush1.msra.mxu0 0.0
    %913 = vmatprep.subr.mxu0 0.0
    %914 = vmatpush1.msra.mxu0 0.0
    %915 = vmatprep.subr.mxu0 0.0
    %916 = vmatpush1.msra.mxu0 0.0
    %917 = vmatprep.subr.mxu0 0.0
    %918 = vmatpush1.msra.mxu0 0.0
    %919 = vmatprep.subr.mxu0 0.0
    %920 = vmatpush1.msra.mxu0 0.0
    %921 = vmatprep.subr.mxu0 0.0
    %922 = vmatpush1.msra.mxu0 0.0
    %923 = vmatprep.subr.mxu0 0.0
    %924 = vmatpush1.msra.mxu0 0.0
    %925 = vmatprep.subr.mxu0 0.0
    %926 = vmatpush1.msra.mxu0 0.0
    %927 = vmatprep.subr.mxu0 0.0
    %928 = vmatpush1.msra.mxu0 0.0
    %929 = vmatprep.subr.mxu0 0.0
    %930 = vmatpush1.msra.mxu0 0.0
    %931 = vmatprep.subr.mxu0 0.0
    %932 = vmatpush1.msra.mxu0 0.0
    %933 = vmatprep.subr.mxu0 0.0
    %934 = vmatpush1.msra.mxu0 0.0
    %935 = vmatprep.subr.mxu0 0.0
    %936 = vmatpush1.msra.mxu0 0.0
    %937 = vmatprep.subr.mxu0 0.0
    %938 = vmatpush1.msra.mxu0 0.0
    %939 = vmatprep.subr.mxu0 0.0
    %940 = vmatpush1.msra.mxu0 0.0
    %941 = vmatprep.subr.mxu0 0.0
    %942 = vmatpush1.msra.mxu0 0.0
    %943 = vmatprep.subr.mxu0 0.0
    %944 = vmatpush1.msra.mxu0 0.0
    %945 = vmatprep.subr.mxu0 0.0
    %946 = vmatpush1.msra.mxu0 0.0
    %947 = vmatprep.subr.mxu0 0.0
    %948 = vmatpush1.msra.mxu0 0.0
    %949 = vmatprep.subr.mxu0 0.0
    %950 = vmatpush1.msra.mxu0 0.0
    %951 = vmatprep.subr.mxu0 0.0
    %952 = vmatpush1.msra.mxu0 0.0
    %953 = vmatprep.subr.mxu0 0.0
    %954 = vmatpush1.msra.mxu0 0.0
    %955 = vmatprep.subr.mxu0 0.0
    %956 = vmatpush1.msra.mxu0 0.0
    %957 = vmatprep.subr.mxu0 0.0
    %958 = vmatpush1.msra.mxu0 0.0
    %959 = vmatprep.subr.mxu0 0.0
    %960 = vmatpush1.msra.mxu0 0.0
    %961 = vmatprep.subr.mxu0 0.0
    %962 = vmatpush1.msra.mxu0 0.0
    %963 = vmatprep.subr.mxu0 0.0
    %964 = vmatpush1.msra.mxu0 0.0
    %965 = vmatprep.mubr.f32.mxu0 0.0
    %966 = vmatmul.mubr.f32.gmra.mrb[0].mxu0 %v899
    %v967 = vpop.f32.mrb[0].mxu0
    %v968 = vadd.f32 %v893, %v967
    %v969 = vpop.f32.mrb[0].mxu0
    %970 = vdwg.mxu0
    %v971 = vtanh.pop %v968
    %973 = vrot.lane.b32.xlu0 %v31, 32
    %v974 = vpop.permute.xlu0 %973
    %v976 = vsel %vm50, %v971, %v974
    %v977 = vld [vmem:[%s5] sm:$0xff]
    %v978 = vld [vmem:[%s5 + $0x8] sm:$0xff]
    %v979 = vld [vmem:[%s5 + $0x10] sm:$0xff]
    %v980 = vld [vmem:[%s5 + $0x18] sm:$0xff]
    %v981 = vld [vmem:[%s5 + $0x20] sm:$0xff]
    %v982 = vld [vmem:[%s5 + $0x28] sm:$0xff]
    %v983 = vlaneseq
    %v984 = vshrl.u32 %v983, 7
    %v985 = vsub.s32 1, %v984
    %v986 = vrot.slane %v45, %v985
    %vm987 = vcmask 392192
    %v989 = vsel %vm987, %v976, 0
    %991 = vmatprep.subr.mxu0 0.0
    %992 = vmatpush1.msra.mxu0 %v977
    %993 = vmatprep.subr.mxu0 0.0
    %994 = vmatpush1.msra.mxu0 %v978
    %995 = vmatprep.subr.mxu0 0.0
    %996 = vmatpush1.msra.mxu0 %v979
    %997 = vmatprep.subr.mxu0 0.0
    %998 = vmatpush1.msra.mxu0 %v980
    %999 = vmatprep.subr.mxu0 0.0
    %1000 = vmatpush1.msra.mxu0 %v981
    %1001 = vmatprep.subr.mxu0 0.0
    %1002 = vmatpush1.msra.mxu0 %v982
    %1003 = vmatprep.subr.mxu0 0.0
    %1004 = vmatpush1.msra.mxu0 0.0
    %1005 = vmatprep.subr.mxu0 0.0
    %1006 = vmatpush1.msra.mxu0 0.0
    %1007 = vmatprep.subr.mxu0 0.0
    %1008 = vmatpush1.msra.mxu0 0.0
    %1009 = vmatprep.subr.mxu0 0.0
    %1010 = vmatpush1.msra.mxu0 0.0
    %1011 = vmatprep.subr.mxu0 0.0
    %1012 = vmatpush1.msra.mxu0 0.0
    %1013 = vmatprep.subr.mxu0 0.0
    %1014 = vmatpush1.msra.mxu0 0.0
    %1015 = vmatprep.subr.mxu0 0.0
    %1016 = vmatpush1.msra.mxu0 0.0
    %1017 = vmatprep.subr.mxu0 0.0
    %1018 = vmatpush1.msra.mxu0 0.0
    %1019 = vmatprep.subr.mxu0 0.0
    %1020 = vmatpush1.msra.mxu0 0.0
    %1021 = vmatprep.subr.mxu0 0.0
    %1022 = vmatpush1.msra.mxu0 0.0
    %1023 = vmatprep.subr.mxu0 0.0
    %1024 = vmatpush1.msra.mxu0 0.0
    %1025 = vmatprep.subr.mxu0 0.0
    %1026 = vmatpush1.msra.mxu0 0.0
    %1027 = vmatprep.subr.mxu0 0.0
    %1028 = vmatpush1.msra.mxu0 0.0
    %1029 = vmatprep.subr.mxu0 0.0
    %1030 = vmatpush1.msra.mxu0 0.0
    %1031 = vmatprep.subr.mxu0 0.0
    %1032 = vmatpush1.msra.mxu0 0.0
    %1033 = vmatprep.subr.mxu0 0.0
    %1034 = vmatpush1.msra.mxu0 0.0
    %1035 = vmatprep.subr.mxu0 0.0
    %1036 = vmatpush1.msra.mxu0 0.0
    %1037 = vmatprep.subr.mxu0 0.0
    %1038 = vmatpush1.msra.mxu0 0.0
    %1039 = vmatprep.subr.mxu0 0.0
    %1040 = vmatpush1.msra.mxu0 0.0
    %1041 = vmatprep.subr.mxu0 0.0
    %1042 = vmatpush1.msra.mxu0 0.0
    %1043 = vmatprep.subr.mxu0 0.0
    %1044 = vmatpush1.msra.mxu0 0.0
    %1045 = vmatprep.subr.mxu0 0.0
    %1046 = vmatpush1.msra.mxu0 0.0
    %1047 = vmatprep.subr.mxu0 0.0
    %1048 = vmatpush1.msra.mxu0 0.0
    %1049 = vmatprep.subr.mxu0 0.0
    %1050 = vmatpush1.msra.mxu0 0.0
    %1051 = vmatprep.subr.mxu0 0.0
    %1052 = vmatpush1.msra.mxu0 0.0
    %1053 = vmatprep.subr.mxu0 0.0
    %1054 = vmatpush1.msra.mxu0 0.0
    %1055 = vmatprep.mubr.f32.mxu0 0.0
    %1056 = vmatmul.mubr.f32.gmra.mrb[0].mxu0 %v989
    %v1057 = vpop.f32.mrb[0].mxu0
    %v1058 = vadd.f32 %v986, %v1057
    %v1059 = vpop.f32.mrb[0].mxu0
    %1060 = vdwg.mxu0
    %1061 = vst [vmem:[#allocation2] sm:$0x3] %v1058
    // Predicated region
    $region30: #{custom_model_forward.1} parent=1 // pred_check
      _
    $region31: #{custom_model_forward.1} parent=1 // pred_check_branch
      %1063 = sbr.rel (0) target = $region33
    $region32: #{custom_model_forward.1} parent=1 // pred_region
      %s1065 = ssub.s32 32, 32
      %1066 = vsyncadd [#allocation3], %s1065
      %s1068 = sshll.u32 [#allocation2], 4
      %s1069 = int_to_ptr.vmem [resolvable:$true] %s1068
      %1071 = dma.vmem_to_hbm [thread:$0]  %s1069, 32, %s7, [#allocation3]
    $region33: #{custom_model_forward.1} parent=1 // pred_fallthru
      _
    // Predicated region
    $region34: #{custom_model_forward.1} parent=1 // pred_check
      _
    $region35: #{custom_model_forward.1} parent=1 // pred_check_branch
      %1073 = sbr.rel (0) target = $region37
    $region36: #{custom_model_forward.1} parent=1 // pred_region
      %1074 = dma.done [#allocation3], 32
    $region37: #{custom_model_forward.1} parent=1 // pred_fallthru
      _
    %1075 = vsyncpa [#allocation3], 1

</llo_original>
